<compile_context>
chip_gen: v7x
topology: tpu7x:2x2x1
jax: 0.10.0
libtpu: 0.0.40
codegen_flags: <defaults>
</compile_context>

<pallas_src>
import jax
import jax.numpy as jnp
from jax.experimental import pallas as pl
from jax.experimental.pallas import tpu as pltpu


def _round_up(x: int, m: int) -> int:
    return ((x + m - 1) // m) * m


def _lora_kernel(x_ref, a_ref, b_ref, o_ref):
    # alpha is pre-folded into A by the wrapper.
    x = x_ref[...]
    xa = jnp.dot(x, a_ref[...].astype(x.dtype), preferred_element_type=jnp.float32)
    # Feed the MXU its native dtype for bf16 inputs; keep f32 inputs in f32 so the
    # result stays close to an f32 reference.  f32 accumulation on both dots.
    if x.dtype != jnp.float32:
        xa = xa.astype(x.dtype)
    out = jnp.dot(xa, b_ref[...].astype(xa.dtype), preferred_element_type=jnp.float32)
    o_ref[...] = out.astype(o_ref.dtype)


def lora_forward(x, A, B, alpha, *, tm_target: int = 512, compute_dtype=None,
                 vmem_limit_bytes: int = 64 << 20):
    """alpha * (x @ A @ B) via a row-tiled Pallas kernel.

    x: [..., in_dim], A: [in_dim, rank], B: [rank, out_dim] -> [..., out_dim].
    alpha may be a Python float or a traced scalar; it never forces a recompile.
    """
    *lead, in_dim = x.shape
    rank, out_dim = B.shape
    assert A.shape == (in_dim, rank)

    x2d = x.reshape(-1, in_dim)
    if compute_dtype is not None:
        x2d = x2d.astype(compute_dtype)
    M = x2d.shape[0]

    # Fold alpha into A (tiny [in_dim, rank] multiply; dynamic, no recompiles).
    A_scaled = A * jnp.asarray(alpha, dtype=A.dtype)

    # Row tile: multiple of 8 sublanes, capped at tm_target, no bigger than
    # round_up(M, 8).  Keep TM modest relative to M so the "parallel" axis still
    # has >= 2 tiles per core on megacore parts.
    TM = min(_round_up(tm_target, 8), _round_up(M, 8))
    grid = (pl.cdiv(M, TM),)

    out_dtype = x2d.dtype

    def call(single_buffer_weights: bool):
        resident_kwargs = {}
        if single_buffer_weights:
            resident_kwargs = dict(pipeline_mode=pl.Buffered(1))
        in_specs = [
            # x: one row tile per grid step (auto double-buffered / pipelined).
            pl.BlockSpec((TM, in_dim), lambda i: (i, 0)),
            # A, B: full-array blocks, constant index -> loaded once, resident.
            pl.BlockSpec((in_dim, rank), lambda i: (0, 0), **resident_kwargs),
            pl.BlockSpec((rank, out_dim), lambda i: (0, 0), **resident_kwargs),
        ]
        return pl.pallas_call(
            _lora_kernel,
            out_shape=jax.ShapeDtypeStruct((M, out_dim), out_dtype),
            grid_spec=pltpu.PrefetchScalarGridSpec(
                num_scalar_prefetch=0,
                grid=grid,
                in_specs=in_specs,
                out_specs=pl.BlockSpec((TM, out_dim), lambda i: (i, 0)),
            ),
            compiler_params=pltpu.CompilerParams(
                dimension_semantics=("parallel",),
                vmem_limit_bytes=vmem_limit_bytes,
            ),
        )(x2d, A_scaled, B)

    if hasattr(pl, "Buffered"):
        try:
            out2d = call(True)
        except Exception:
            # Older/other JAX versions without BlockSpec pipeline_mode support.
            out2d = call(False)
    else:
        out2d = call(False)

    return out2d.reshape(*lead, out_dim)


def init_lora_params(key, in_dim, rank, out_dim, dtype=jnp.float32):
    # Matches nn.init.kaiming_uniform_(A, a=sqrt(5)) for an (in_dim, rank) tensor:
    # fan_in = rank, gain = sqrt(2/(1+5)) -> bound = 1/sqrt(rank).
    bound = 1.0 / (rank ** 0.5)
    A = jax.random.uniform(key, (in_dim, rank), dtype=dtype,
                           minval=-bound, maxval=bound)
    B = jnp.zeros((rank, out_dim), dtype=dtype)  # LoRA B starts at zero
    return A, B


if __name__ == "__main__":
    key = jax.random.PRNGKey(0)
    k_x, k_a, k_b = jax.random.split(key, 3)

    batch, seq, in_dim, out_dim, rank = 2, 4, 32, 32, 8
    alpha = 2.0

    x = jax.random.normal(k_x, (batch, seq, in_dim), dtype=jnp.float32)

    # Module-faithful init (B = 0) ...
    A, B_zero = init_lora_params(k_a, in_dim, rank, out_dim)
    # ... but use a random B for a non-trivial numerical check.
    B = jax.random.normal(k_b, (rank, out_dim), dtype=jnp.float32) * 0.1

    ref = alpha * (x @ A @ B)

    # Non-trivial check (random B), f32 path.
    out = lora_forward(x, A, B, alpha)
    jax.block_until_ready(out)
    assert out.shape == ref.shape
    assert jnp.allclose(out, ref, atol=1e-4, rtol=1e-4), "mismatch vs reference"

    # Module-faithful check (B = 0 -> output must be exactly zero).
    out_zero = lora_forward(x, A, B_zero, alpha)
    jax.block_until_ready(out_zero)
    assert jnp.allclose(out_zero, jnp.zeros_like(out_zero)), "B=0 case mismatch"

    # bf16 compute path smoke test (halves x/out HBM bytes on big shapes).
    out_bf16 = lora_forward(x, A, B, alpha, compute_dtype=jnp.bfloat16)
    jax.block_until_ready(out_bf16)
    assert jnp.allclose(out_bf16.astype(jnp.float32), ref, atol=5e-2, rtol=5e-2), \
        "bf16 path mismatch"

    print("KERNEL_OK")
</pallas_src>

<mosaic_0001>
module attributes {stable_mosaic.version = 11 : i64} {
  func.func @_lora_kernel(%arg0: i32, %arg1: memref<8x32xf32, #tpu.memory_space<vmem>>, %arg2: memref<32x8xf32, #tpu.memory_space<vmem>>, %arg3: memref<8x32xf32, #tpu.memory_space<vmem>>, %arg4: memref<8x32xf32, #tpu.memory_space<vmem>>) attributes {dimension_semantics = [#tpu.dimension_semantics<parallel>], iteration_bounds = array<i64: 1>, scalar_prefetch = 0 : i64, scratch_operands = 0 : i64, tpu.core_type = #tpu.core_type<tc>, window_params = [{transform_indices = @transform_0, window_bounds = array<i64: 8, 32>}, {pipeline_mode = #tpu.pipeline_mode<synchronous>, transform_indices = @transform_1, window_bounds = array<i64: 32, 8>}, {pipeline_mode = #tpu.pipeline_mode<synchronous>, transform_indices = @transform_2, window_bounds = array<i64: 8, 32>}, {transform_indices = @transform_3, window_bounds = array<i64: 8, 32>}]} {
    %c0 = arith.constant 0 : index
    %c0_0 = arith.constant 0 : index
    %0 = vector.load %arg1[%c0, %c0_0] : memref<8x32xf32, #tpu.memory_space<vmem>>, vector<8x32xf32>
    %c0_1 = arith.constant 0 : index
    %c0_2 = arith.constant 0 : index
    %1 = vector.load %arg2[%c0_1, %c0_2] : memref<32x8xf32, #tpu.memory_space<vmem>>, vector<32x8xf32>
    %cst = arith.constant dense<0.000000e+00> : vector<8x8xf32>
    %2 = tpu.matmul %0, %1, %cst {dimension_numbers = #tpu.dot_dimension_numbers<[1], [0], [0], [1], [0, 0, 1, 1], [], []>} : vector<8x32xf32>, vector<32x8xf32>, vector<8x8xf32> -> vector<8x8xf32>
    %c0_3 = arith.constant 0 : index
    %c0_4 = arith.constant 0 : index
    %3 = vector.load %arg3[%c0_3, %c0_4] : memref<8x32xf32, #tpu.memory_space<vmem>>, vector<8x32xf32>
    %cst_5 = arith.constant dense<0.000000e+00> : vector<8x32xf32>
    %4 = tpu.matmul %2, %3, %cst_5 {dimension_numbers = #tpu.dot_dimension_numbers<[1], [0], [0], [1], [0, 0, 1, 1], [], []>} : vector<8x8xf32>, vector<8x32xf32>, vector<8x32xf32> -> vector<8x32xf32>
    %c0_6 = arith.constant 0 : index
    %c0_7 = arith.constant 0 : index
    %5 = vector.load %arg4[%c0_6, %c0_7] : memref<8x32xf32, #tpu.memory_space<vmem>>, vector<8x32xf32>
    tpu.vector_store %arg4[%c0_6, %c0_7], %4 {strides = array<i32>} : memref<8x32xf32, #tpu.memory_space<vmem>>, vector<8x32xf32>,
    return
  }
  func.func @transform_0(%arg0: i32) -> (i32, i32) {
    %c0_i32 = arith.constant 0 : i32
    %c0_i32_0 = arith.constant 0 : i32
    return %arg0, %c0_i32 : i32, i32
  }
  func.func @transform_1(%arg0: i32) -> (i32, i32) {
    %c0_i32 = arith.constant 0 : i32
    %c0_i32_0 = arith.constant 0 : i32
    %c0_i32_1 = arith.constant 0 : i32
    return %c0_i32, %c0_i32_0 : i32, i32
  }
  func.func @transform_2(%arg0: i32) -> (i32, i32) {
    %c0_i32 = arith.constant 0 : i32
    %c0_i32_0 = arith.constant 0 : i32
    %c0_i32_1 = arith.constant 0 : i32
    return %c0_i32, %c0_i32_0 : i32, i32
  }
  func.func @transform_3(%arg0: i32) -> (i32, i32) {
    %c0_i32 = arith.constant 0 : i32
    %c0_i32_0 = arith.constant 0 : i32
    return %arg0, %c0_i32 : i32, i32
  }
}

module attributes {stable_mosaic.version = 11 : i64} {
  func.func @_lora_kernel(%arg0: i32, %arg1: memref<8x32xf32, #tpu.memory_space<vmem>>, %arg2: memref<32x8xf32, #tpu.memory_space<vmem>>, %arg3: memref<8x32xf32, #tpu.memory_space<vmem>>, %arg4: memref<8x32xf32, #tpu.memory_space<vmem>>) attributes {dimension_semantics = [#tpu.dimension_semantics<parallel>], iteration_bounds = array<i64: 1>, scalar_prefetch = 0 : i64, scratch_operands = 0 : i64, tpu.core_type = #tpu.core_type<tc>, window_params = [{transform_indices = @transform_0, window_bounds = array<i64: 8, 32>}, {pipeline_mode = #tpu.pipeline_mode<synchronous>, transform_indices = @transform_1, window_bounds = array<i64: 32, 8>}, {pipeline_mode = #tpu.pipeline_mode<synchronous>, transform_indices = @transform_2, window_bounds = array<i64: 8, 32>}, {transform_indices = @transform_3, window_bounds = array<i64: 8, 32>}]} {
    %c0 = arith.constant 0 : index
    %c0_0 = arith.constant 0 : index
    %0 = vector.load %arg1[%c0, %c0_0] : memref<8x32xf32, #tpu.memory_space<vmem>>, vector<8x32xf32>
    %c0_1 = arith.constant 0 : index
    %c0_2 = arith.constant 0 : index
    %1 = vector.load %arg2[%c0_1, %c0_2] : memref<32x8xf32, #tpu.memory_space<vmem>>, vector<32x8xf32>
    %cst = arith.constant dense<0.000000e+00> : vector<8x8xf32>
    %2 = tpu.matmul %0, %1, %cst {dimension_numbers = #tpu.dot_dimension_numbers<[1], [0], [0], [1], [0, 0, 1, 1], [], []>} : vector<8x32xf32>, vector<32x8xf32>, vector<8x8xf32> -> vector<8x8xf32>
    %c0_3 = arith.constant 0 : index
    %c0_4 = arith.constant 0 : index
    %3 = vector.load %arg3[%c0_3, %c0_4] : memref<8x32xf32, #tpu.memory_space<vmem>>, vector<8x32xf32>
    %cst_5 = arith.constant dense<0.000000e+00> : vector<8x32xf32>
    %4 = tpu.matmul %2, %3, %cst_5 {dimension_numbers = #tpu.dot_dimension_numbers<[1], [0], [0], [1], [0, 0, 1, 1], [], []>} : vector<8x8xf32>, vector<8x32xf32>, vector<8x32xf32> -> vector<8x32xf32>
    %c0_6 = arith.constant 0 : index
    %c0_7 = arith.constant 0 : index
    %5 = vector.load %arg4[%c0_6, %c0_7] : memref<8x32xf32, #tpu.memory_space<vmem>>, vector<8x32xf32>
    tpu.vector_store %arg4[%c0_6, %c0_7], %4 {strides = array<i32>} : memref<8x32xf32, #tpu.memory_space<vmem>>, vector<8x32xf32>,
    return
  }
  func.func @transform_0(%arg0: i32) -> (i32, i32) {
    %c0_i32 = arith.constant 0 : i32
    %c0_i32_0 = arith.constant 0 : i32
    return %arg0, %c0_i32 : i32, i32
  }
  func.func @transform_1(%arg0: i32) -> (i32, i32) {
    %c0_i32 = arith.constant 0 : i32
    %c0_i32_0 = arith.constant 0 : i32
    %c0_i32_1 = arith.constant 0 : i32
    return %c0_i32, %c0_i32_0 : i32, i32
  }
  func.func @transform_2(%arg0: i32) -> (i32, i32) {
    %c0_i32 = arith.constant 0 : i32
    %c0_i32_0 = arith.constant 0 : i32
    %c0_i32_1 = arith.constant 0 : i32
    return %c0_i32, %c0_i32_0 : i32, i32
  }
  func.func @transform_3(%arg0: i32) -> (i32, i32) {
    %c0_i32 = arith.constant 0 : i32
    %c0_i32_0 = arith.constant 0 : i32
    return %arg0, %c0_i32 : i32, i32
  }
}

</mosaic_0001>

<llo_original>
// kernel: tpu_custom_call.1
$region0: #{tpu_custom_call.1}
  #allocation0 [shape = 'u32[]', space=smem, size = 0x4, offset = 0x4, fixed_abs, tag = 'smem constant byte address 0x4 - core index']
  #allocation1 [shape = 'u32[144,128]{1,0:T(1,128)}', space=vmem, size = 0x12000, scoped, tag = 'internal scratch']
  %s0 = inlined_call_operand.hbm [shape: f32[8,32], index: 0, kind: input, shape index: {}]
  %s1 = inlined_call_operand.hbm [shape: f32[32,8], index: 1, kind: input, shape index: {}]
  %s2 = inlined_call_operand.hbm [shape: f32[8,32], index: 2, kind: input, shape index: {}]
  %s3 = inlined_call_operand.hbm [shape: f32[8,32], index: 3, kind: output, shape index: {}]
  %s4 = sld [smem:[#allocation0]]
  $region34: #{tpu_custom_call.1} parent=0
    _
  %s6 = ssub.s32 1, %s4
  %s7 = scalar_select 0, %s6, %s4
  $region1: #{tpu_custom_call.1} parent=0
    #allocation2 [shape = 'u8[4096]{0}', space=vmem, size = 0x1000, scoped, tag = 'input window, operand 0, single buffered']
    #allocation3 [shape = 's32[1]{0}', space=sflag, size = 0x4, scoped, tag = 'scoped memory for tpu_custom_call.1']
    #allocation4 [shape = 's32[1]{0}', space=sflag, size = 0x4, scoped, tag = 'scoped memory for tpu_custom_call.1']
    #allocation5 [shape = 'u8[16384]{0}', space=vmem, size = 0x4000, scoped, tag = 'input window, operand 1, single buffered']
    #allocation6 [shape = 's32[1]{0}', space=sflag, size = 0x4, scoped, tag = 'scoped memory for tpu_custom_call.1']
    #allocation7 [shape = 'u8[4096]{0}', space=vmem, size = 0x1000, scoped, tag = 'input window, operand 2, single buffered']
    #allocation8 [shape = 'u8[4096]{0}', space=vmem, size = 0x1000, scoped, tag = 'output window, operand 0, single buffered']
    %8 = vsyncpa [#allocation3], 0
    %9 = vsyncpa [#allocation6], 0
    %10 = vsyncpa [#allocation4], 0
    // Predicated region
    $region2: #{tpu_custom_call.1} parent=1 // pred_check
      _
    $region3: #{tpu_custom_call.1} parent=1 // pred_check_branch
      %12 = sbr.rel (0) target = $region5
    $region4: #{tpu_custom_call.1} parent=1 // pred_region
      %s14 = ssub.s32 128, 128
      %15 = vsyncadd [#allocation3], %s14
      %s17 = sshll.u32 [#allocation2], 4
      %s18 = int_to_ptr.vmem [resolvable:$true] %s17
      %20 = dma.hbm_to_vmem [thread:$0]  %s0, 128, %s18, [#allocation3]
    $region5: #{tpu_custom_call.1} parent=1 // pred_fallthru
      _
    // Predicated region
    $region6: #{tpu_custom_call.1} parent=1 // pred_check
      _
    $region7: #{tpu_custom_call.1} parent=1 // pred_check_branch
      %22 = sbr.rel (0) target = $region9
    $region8: #{tpu_custom_call.1} parent=1 // pred_region
      %s24 = ssub.s32 512, 512
      %25 = vsyncadd [#allocation6], %s24
      %s26 = sshll.u32 [#allocation5], 4
      %s27 = int_to_ptr.vmem [resolvable:$true] %s26
      %32 = dma.hbm_to_vmem [thread:$0]  %s1, 512, %s27, [#allocation6], 128, 128, 8
    $region9: #{tpu_custom_call.1} parent=1 // pred_fallthru
      _
    // Predicated region
    $region10: #{tpu_custom_call.1} parent=1 // pred_check
      _
    $region11: #{tpu_custom_call.1} parent=1 // pred_check_branch
      %34 = sbr.rel (0) target = $region13
    $region12: #{tpu_custom_call.1} parent=1 // pred_region
      %s36 = ssub.s32 128, 128
      %37 = vsyncadd [#allocation6], %s36
      %s39 = sshll.u32 [#allocation7], 4
      %s40 = int_to_ptr.vmem [resolvable:$true] %s39
      %42 = dma.hbm_to_vmem [thread:$0]  %s2, 128, %s40, [#allocation6]
    $region13: #{tpu_custom_call.1} parent=1 // pred_fallthru
      _
    // Predicated region
    $region14: #{tpu_custom_call.1} parent=1 // pred_check
      _
    $region15: #{tpu_custom_call.1} parent=1 // pred_check_branch
      %44 = sbr.rel (0) target = $region17
    $region16: #{tpu_custom_call.1} parent=1 // pred_region
      %45 = dma.done [#allocation3], 128
    $region17: #{tpu_custom_call.1} parent=1 // pred_fallthru
      _
    // Predicated region
    $region18: #{tpu_custom_call.1} parent=1 // pred_check
      _
    $region19: #{tpu_custom_call.1} parent=1 // pred_check_branch
      %47 = sbr.rel (0) target = $region21
    $region20: #{tpu_custom_call.1} parent=1 // pred_region
      %48 = dma.done [#allocation6], 512
    $region21: #{tpu_custom_call.1} parent=1 // pred_fallthru
      _
    // Predicated region
    $region22: #{tpu_custom_call.1} parent=1 // pred_check
      _
    $region23: #{tpu_custom_call.1} parent=1 // pred_check_branch
      %50 = sbr.rel (0) target = $region25
    $region24: #{tpu_custom_call.1} parent=1 // pred_region
      %51 = dma.done [#allocation6], 128
    $region25: #{tpu_custom_call.1} parent=1 // pred_fallthru
      _
    %v52 = vld [vmem:[#allocation2] sm:$0xff]
    %v53 = vld [vmem:[#allocation5] sm:$0xff]
    %v54 = vld [vmem:[#allocation5 + $0x8] sm:$0xff]
    %v55 = vld [vmem:[#allocation5 + $0x10] sm:$0xff]
    %v56 = vld [vmem:[#allocation5 + $0x18] sm:$0xff]
    %vm57 = vcmask 261120
    %v59 = vsel %vm57, %v52, 0
    %61 = vmatprep.subr.mxu0 0.0
    %62 = vmatpush1.msra.mxu0 %v53
    %63 = vmatprep.subr.mxu0 0.0
    %64 = vmatpush1.msra.mxu0 %v54
    %65 = vmatprep.subr.mxu0 0.0
    %66 = vmatpush1.msra.mxu0 %v55
    %67 = vmatprep.subr.mxu0 0.0
    %68 = vmatpush1.msra.mxu0 %v56
    %69 = vmatprep.subr.mxu0 0.0
    %70 = vmatpush1.msra.mxu0 0.0
    %71 = vmatprep.subr.mxu0 0.0
    %72 = vmatpush1.msra.mxu0 0.0
    %73 = vmatprep.subr.mxu0 0.0
    %74 = vmatpush1.msra.mxu0 0.0
    %75 = vmatprep.subr.mxu0 0.0
    %76 = vmatpush1.msra.mxu0 0.0
    %77 = vmatprep.subr.mxu0 0.0
    %78 = vmatpush1.msra.mxu0 0.0
    %79 = vmatprep.subr.mxu0 0.0
    %80 = vmatpush1.msra.mxu0 0.0
    %81 = vmatprep.subr.mxu0 0.0
    %82 = vmatpush1.msra.mxu0 0.0
    %83 = vmatprep.subr.mxu0 0.0
    %84 = vmatpush1.msra.mxu0 0.0
    %85 = vmatprep.subr.mxu0 0.0
    %86 = vmatpush1.msra.mxu0 0.0
    %87 = vmatprep.subr.mxu0 0.0
    %88 = vmatpush1.msra.mxu0 0.0
    %89 = vmatprep.subr.mxu0 0.0
    %90 = vmatpush1.msra.mxu0 0.0
    %91 = vmatprep.subr.mxu0 0.0
    %92 = vmatpush1.msra.mxu0 0.0
    %93 = vmatprep.subr.mxu0 0.0
    %94 = vmatpush1.msra.mxu0 0.0
    %95 = vmatprep.subr.mxu0 0.0
    %96 = vmatpush1.msra.mxu0 0.0
    %97 = vmatprep.subr.mxu0 0.0
    %98 = vmatpush1.msra.mxu0 0.0
    %99 = vmatprep.subr.mxu0 0.0
    %100 = vmatpush1.msra.mxu0 0.0
    %101 = vmatprep.subr.mxu0 0.0
    %102 = vmatpush1.msra.mxu0 0.0
    %103 = vmatprep.subr.mxu0 0.0
    %104 = vmatpush1.msra.mxu0 0.0
    %105 = vmatprep.subr.mxu0 0.0
    %106 = vmatpush1.msra.mxu0 0.0
    %107 = vmatprep.subr.mxu0 0.0
    %108 = vmatpush1.msra.mxu0 0.0
    %109 = vmatprep.subr.mxu0 0.0
    %110 = vmatpush1.msra.mxu0 0.0
    %111 = vmatprep.subr.mxu0 0.0
    %112 = vmatpush1.msra.mxu0 0.0
    %113 = vmatprep.subr.mxu0 0.0
    %114 = vmatpush1.msra.mxu0 0.0
    %115 = vmatprep.subr.mxu0 0.0
    %116 = vmatpush1.msra.mxu0 0.0
    %117 = vmatprep.subr.mxu0 0.0
    %118 = vmatpush1.msra.mxu0 0.0
    %119 = vmatprep.subr.mxu0 0.0
    %120 = vmatpush1.msra.mxu0 0.0
    %121 = vmatprep.subr.mxu0 0.0
    %122 = vmatpush1.msra.mxu0 0.0
    %123 = vmatprep.subr.mxu0 0.0
    %124 = vmatpush1.msra.mxu0 0.0
    %125 = vmatprep.mubr.f32.mxu0 0.0
    %126 = vmatmul.mubr.f32.gmra.mrb[0].mxu0 %v59
    %v127 = vpop.f32.mrb[0].mxu0
    %v128 = vadd.f32 0.0, %v127
    %v129 = vpop.f32.mrb[0].mxu0
    %130 = vdwg.mxu0
    %v131 = vld [vmem:[#allocation7] sm:$0xff]
    %vm132 = vcmask 64512
    %v134 = vsel %vm132, %v128, 0
    %136 = vmatprep.subr.mxu0 0.0
    %137 = vmatpush1.msra.mxu0 %v131
    %138 = vmatprep.subr.mxu0 0.0
    %139 = vmatpush1.msra.mxu0 0.0
    %140 = vmatprep.subr.mxu0 0.0
    %141 = vmatpush1.msra.mxu0 0.0
    %142 = vmatprep.subr.mxu0 0.0
    %143 = vmatpush1.msra.mxu0 0.0
    %144 = vmatprep.subr.mxu0 0.0
    %145 = vmatpush1.msra.mxu0 0.0
    %146 = vmatprep.subr.mxu0 0.0
    %147 = vmatpush1.msra.mxu0 0.0
    %148 = vmatprep.subr.mxu0 0.0
    %149 = vmatpush1.msra.mxu0 0.0
    %150 = vmatprep.subr.mxu0 0.0
    %151 = vmatpush1.msra.mxu0 0.0
    %152 = vmatprep.subr.mxu0 0.0
    %153 = vmatpush1.msra.mxu0 0.0
    %154 = vmatprep.subr.mxu0 0.0
    %155 = vmatpush1.msra.mxu0 0.0
    %156 = vmatprep.subr.mxu0 0.0
    %157 = vmatpush1.msra.mxu0 0.0
    %158 = vmatprep.subr.mxu0 0.0
    %159 = vmatpush1.msra.mxu0 0.0
    %160 = vmatprep.subr.mxu0 0.0
    %161 = vmatpush1.msra.mxu0 0.0
    %162 = vmatprep.subr.mxu0 0.0
    %163 = vmatpush1.msra.mxu0 0.0
    %164 = vmatprep.subr.mxu0 0.0
    %165 = vmatpush1.msra.mxu0 0.0
    %166 = vmatprep.subr.mxu0 0.0
    %167 = vmatpush1.msra.mxu0 0.0
    %168 = vmatprep.subr.mxu0 0.0
    %169 = vmatpush1.msra.mxu0 0.0
    %170 = vmatprep.subr.mxu0 0.0
    %171 = vmatpush1.msra.mxu0 0.0
    %172 = vmatprep.subr.mxu0 0.0
    %173 = vmatpush1.msra.mxu0 0.0
    %174 = vmatprep.subr.mxu0 0.0
    %175 = vmatpush1.msra.mxu0 0.0
    %176 = vmatprep.subr.mxu0 0.0
    %177 = vmatpush1.msra.mxu0 0.0
    %178 = vmatprep.subr.mxu0 0.0
    %179 = vmatpush1.msra.mxu0 0.0
    %180 = vmatprep.subr.mxu0 0.0
    %181 = vmatpush1.msra.mxu0 0.0
    %182 = vmatprep.subr.mxu0 0.0
    %183 = vmatpush1.msra.mxu0 0.0
    %184 = vmatprep.subr.mxu0 0.0
    %185 = vmatpush1.msra.mxu0 0.0
    %186 = vmatprep.subr.mxu0 0.0
    %187 = vmatpush1.msra.mxu0 0.0
    %188 = vmatprep.subr.mxu0 0.0
    %189 = vmatpush1.msra.mxu0 0.0
    %190 = vmatprep.subr.mxu0 0.0
    %191 = vmatpush1.msra.mxu0 0.0
    %192 = vmatprep.subr.mxu0 0.0
    %193 = vmatpush1.msra.mxu0 0.0
    %194 = vmatprep.subr.mxu0 0.0
    %195 = vmatpush1.msra.mxu0 0.0
    %196 = vmatprep.subr.mxu0 0.0
    %197 = vmatpush1.msra.mxu0 0.0
    %198 = vmatprep.subr.mxu0 0.0
    %199 = vmatpush1.msra.mxu0 0.0
    %200 = vmatprep.mubr.f32.mxu0 0.0
    %201 = vmatmul.mubr.f32.gmra.mrb[0].mxu0 %v134
    %v202 = vpop.f32.mrb[0].mxu0
    %v203 = vadd.f32 0.0, %v202
    %v204 = vpop.f32.mrb[0].mxu0
    %205 = vdwg.mxu0
    %206 = vst.msk [vmem:[#allocation8] sm:$0xff] %vm57, %v203
    // Predicated region
    $region26: #{tpu_custom_call.1} parent=1 // pred_check
      _
    $region27: #{tpu_custom_call.1} parent=1 // pred_check_branch
      %208 = sbr.rel (0) target = $region29
    $region28: #{tpu_custom_call.1} parent=1 // pred_region
      %s210 = ssub.s32 128, 128
      %211 = vsyncadd [#allocation4], %s210
      %s213 = sshll.u32 [#allocation8], 4
      %s214 = int_to_ptr.vmem [resolvable:$true] %s213
      %216 = dma.vmem_to_hbm [thread:$0]  %s214, 128, %s3, [#allocation4]
    $region29: #{tpu_custom_call.1} parent=1 // pred_fallthru
      _
    // Predicated region
    $region30: #{tpu_custom_call.1} parent=1 // pred_check
      _
    $region31: #{tpu_custom_call.1} parent=1 // pred_check_branch
      %218 = sbr.rel (0) target = $region33
    $region32: #{tpu_custom_call.1} parent=1 // pred_region
      %219 = dma.done [#allocation4], 128
    $region33: #{tpu_custom_call.1} parent=1 // pred_fallthru
      _
    %220 = vsyncpa [#allocation3], 1
    %221 = vsyncpa [#allocation6], 1
    %222 = vsyncpa [#allocation4], 1

// kernel: tpu_custom_call.1
$region0: #{tpu_custom_call.1}
  #allocation0 [shape = 'u32[]', space=smem, size = 0x4, offset = 0x4, fixed_abs, tag = 'smem constant byte address 0x4 - core index']
  #allocation1 [shape = 'u32[144,128]{1,0:T(1,128)}', space=vmem, size = 0x12000, scoped, tag = 'internal scratch']
  %s0 = inlined_call_operand.hbm [shape: f32[8,32], index: 0, kind: input, shape index: {}]
  %s1 = inlined_call_operand.hbm [shape: f32[32,8], index: 1, kind: input, shape index: {}]
  %s2 = inlined_call_operand.hbm [shape: f32[8,32], index: 2, kind: input, shape index: {}]
  %s3 = inlined_call_operand.hbm [shape: f32[8,32], index: 3, kind: output, shape index: {}]
  %s4 = sld [smem:[#allocation0]]
  $region34: #{tpu_custom_call.1} parent=0
    _
  %s6 = ssub.s32 1, %s4
  %s7 = scalar_select 0, %s6, %s4
  $region1: #{tpu_custom_call.1} parent=0
    #allocation2 [shape = 'u8[4096]{0}', space=vmem, size = 0x1000, scoped, tag = 'input window, operand 0, single buffered']
    #allocation3 [shape = 's32[1]{0}', space=sflag, size = 0x4, scoped, tag = 'scoped memory for tpu_custom_call.1']
    #allocation4 [shape = 's32[1]{0}', space=sflag, size = 0x4, scoped, tag = 'scoped memory for tpu_custom_call.1']
    #allocation5 [shape = 'u8[16384]{0}', space=vmem, size = 0x4000, scoped, tag = 'input window, operand 1, single buffered']
    #allocation6 [shape = 's32[1]{0}', space=sflag, size = 0x4, scoped, tag = 'scoped memory for tpu_custom_call.1']
    #allocation7 [shape = 'u8[4096]{0}', space=vmem, size = 0x1000, scoped, tag = 'input window, operand 2, single buffered']
    #allocation8 [shape = 'u8[4096]{0}', space=vmem, size = 0x1000, scoped, tag = 'output window, operand 0, single buffered']
    %8 = vsyncpa [#allocation3], 0
    %9 = vsyncpa [#allocation6], 0
    %10 = vsyncpa [#allocation4], 0
    // Predicated region
    $region2: #{tpu_custom_call.1} parent=1 // pred_check
      _
    $region3: #{tpu_custom_call.1} parent=1 // pred_check_branch
      %12 = sbr.rel (0) target = $region5
    $region4: #{tpu_custom_call.1} parent=1 // pred_region
      %s14 = ssub.s32 128, 128
      %15 = vsyncadd [#allocation3], %s14
      %s17 = sshll.u32 [#allocation2], 4
      %s18 = int_to_ptr.vmem [resolvable:$true] %s17
      %20 = dma.hbm_to_vmem [thread:$0]  %s0, 128, %s18, [#allocation3]
    $region5: #{tpu_custom_call.1} parent=1 // pred_fallthru
      _
    // Predicated region
    $region6: #{tpu_custom_call.1} parent=1 // pred_check
      _
    $region7: #{tpu_custom_call.1} parent=1 // pred_check_branch
      %22 = sbr.rel (0) target = $region9
    $region8: #{tpu_custom_call.1} parent=1 // pred_region
      %s24 = ssub.s32 512, 512
      %25 = vsyncadd [#allocation6], %s24
      %s26 = sshll.u32 [#allocation5], 4
      %s27 = int_to_ptr.vmem [resolvable:$true] %s26
      %32 = dma.hbm_to_vmem [thread:$0]  %s1, 512, %s27, [#allocation6], 128, 128, 8
    $region9: #{tpu_custom_call.1} parent=1 // pred_fallthru
      _
    // Predicated region
    $region10: #{tpu_custom_call.1} parent=1 // pred_check
      _
    $region11: #{tpu_custom_call.1} parent=1 // pred_check_branch
      %34 = sbr.rel (0) target = $region13
    $region12: #{tpu_custom_call.1} parent=1 // pred_region
      %s36 = ssub.s32 128, 128
      %37 = vsyncadd [#allocation6], %s36
      %s39 = sshll.u32 [#allocation7], 4
      %s40 = int_to_ptr.vmem [resolvable:$true] %s39
      %42 = dma.hbm_to_vmem [thread:$0]  %s2, 128, %s40, [#allocation6]
    $region13: #{tpu_custom_call.1} parent=1 // pred_fallthru
      _
    // Predicated region
    $region14: #{tpu_custom_call.1} parent=1 // pred_check
      _
    $region15: #{tpu_custom_call.1} parent=1 // pred_check_branch
      %44 = sbr.rel (0) target = $region17
    $region16: #{tpu_custom_call.1} parent=1 // pred_region
      %45 = dma.done [#allocation3], 128
    $region17: #{tpu_custom_call.1} parent=1 // pred_fallthru
      _
    // Predicated region
    $region18: #{tpu_custom_call.1} parent=1 // pred_check
      _
    $region19: #{tpu_custom_call.1} parent=1 // pred_check_branch
      %47 = sbr.rel (0) target = $region21
    $region20: #{tpu_custom_call.1} parent=1 // pred_region
      %48 = dma.done [#allocation6], 512
    $region21: #{tpu_custom_call.1} parent=1 // pred_fallthru
      _
    // Predicated region
    $region22: #{tpu_custom_call.1} parent=1 // pred_check
      _
    $region23: #{tpu_custom_call.1} parent=1 // pred_check_branch
      %50 = sbr.rel (0) target = $region25
    $region24: #{tpu_custom_call.1} parent=1 // pred_region
      %51 = dma.done [#allocation6], 128
    $region25: #{tpu_custom_call.1} parent=1 // pred_fallthru
      _
    %v52 = vld [vmem:[#allocation2] sm:$0xff]
    %v53 = vld [vmem:[#allocation5] sm:$0xff]
    %v54 = vld [vmem:[#allocation5 + $0x8] sm:$0xff]
    %v55 = vld [vmem:[#allocation5 + $0x10] sm:$0xff]
    %v56 = vld [vmem:[#allocation5 + $0x18] sm:$0xff]
    %vm57 = vcmask 261120
    %v59 = vsel %vm57, %v52, 0
    %61 = vmatprep.subr.mxu0 0.0
    %62 = vmatpush1.msra.mxu0 %v53
    %63 = vmatprep.subr.mxu0 0.0
    %64 = vmatpush1.msra.mxu0 %v54
    %65 = vmatprep.subr.mxu0 0.0
    %66 = vmatpush1.msra.mxu0 %v55
    %67 = vmatprep.subr.mxu0 0.0
    %68 = vmatpush1.msra.mxu0 %v56
    %69 = vmatprep.subr.mxu0 0.0
    %70 = vmatpush1.msra.mxu0 0.0
    %71 = vmatprep.subr.mxu0 0.0
    %72 = vmatpush1.msra.mxu0 0.0
    %73 = vmatprep.subr.mxu0 0.0
    %74 = vmatpush1.msra.mxu0 0.0
    %75 = vmatprep.subr.mxu0 0.0
    %76 = vmatpush1.msra.mxu0 0.0
    %77 = vmatprep.subr.mxu0 0.0
    %78 = vmatpush1.msra.mxu0 0.0
    %79 = vmatprep.subr.mxu0 0.0
    %80 = vmatpush1.msra.mxu0 0.0
    %81 = vmatprep.subr.mxu0 0.0
    %82 = vmatpush1.msra.mxu0 0.0
    %83 = vmatprep.subr.mxu0 0.0
    %84 = vmatpush1.msra.mxu0 0.0
    %85 = vmatprep.subr.mxu0 0.0
    %86 = vmatpush1.msra.mxu0 0.0
    %87 = vmatprep.subr.mxu0 0.0
    %88 = vmatpush1.msra.mxu0 0.0
    %89 = vmatprep.subr.mxu0 0.0
    %90 = vmatpush1.msra.mxu0 0.0
    %91 = vmatprep.subr.mxu0 0.0
    %92 = vmatpush1.msra.mxu0 0.0
    %93 = vmatprep.subr.mxu0 0.0
    %94 = vmatpush1.msra.mxu0 0.0
    %95 = vmatprep.subr.mxu0 0.0
    %96 = vmatpush1.msra.mxu0 0.0
    %97 = vmatprep.subr.mxu0 0.0
    %98 = vmatpush1.msra.mxu0 0.0
    %99 = vmatprep.subr.mxu0 0.0
    %100 = vmatpush1.msra.mxu0 0.0
    %101 = vmatprep.subr.mxu0 0.0
    %102 = vmatpush1.msra.mxu0 0.0
    %103 = vmatprep.subr.mxu0 0.0
    %104 = vmatpush1.msra.mxu0 0.0
    %105 = vmatprep.subr.mxu0 0.0
    %106 = vmatpush1.msra.mxu0 0.0
    %107 = vmatprep.subr.mxu0 0.0
    %108 = vmatpush1.msra.mxu0 0.0
    %109 = vmatprep.subr.mxu0 0.0
    %110 = vmatpush1.msra.mxu0 0.0
    %111 = vmatprep.subr.mxu0 0.0
    %112 = vmatpush1.msra.mxu0 0.0
    %113 = vmatprep.subr.mxu0 0.0
    %114 = vmatpush1.msra.mxu0 0.0
    %115 = vmatprep.subr.mxu0 0.0
    %116 = vmatpush1.msra.mxu0 0.0
    %117 = vmatprep.subr.mxu0 0.0
    %118 = vmatpush1.msra.mxu0 0.0
    %119 = vmatprep.subr.mxu0 0.0
    %120 = vmatpush1.msra.mxu0 0.0
    %121 = vmatprep.subr.mxu0 0.0
    %122 = vmatpush1.msra.mxu0 0.0
    %123 = vmatprep.subr.mxu0 0.0
    %124 = vmatpush1.msra.mxu0 0.0
    %125 = vmatprep.mubr.f32.mxu0 0.0
    %126 = vmatmul.mubr.f32.gmra.mrb[0].mxu0 %v59
    %v127 = vpop.f32.mrb[0].mxu0
    %v128 = vadd.f32 0.0, %v127
    %v129 = vpop.f32.mrb[0].mxu0
    %130 = vdwg.mxu0
    %v131 = vld [vmem:[#allocation7] sm:$0xff]
    %vm132 = vcmask 64512
    %v134 = vsel %vm132, %v128, 0
    %136 = vmatprep.subr.mxu0 0.0
    %137 = vmatpush1.msra.mxu0 %v131
    %138 = vmatprep.subr.mxu0 0.0
    %139 = vmatpush1.msra.mxu0 0.0
    %140 = vmatprep.subr.mxu0 0.0
    %141 = vmatpush1.msra.mxu0 0.0
    %142 = vmatprep.subr.mxu0 0.0
    %143 = vmatpush1.msra.mxu0 0.0
    %144 = vmatprep.subr.mxu0 0.0
    %145 = vmatpush1.msra.mxu0 0.0
    %146 = vmatprep.subr.mxu0 0.0
    %147 = vmatpush1.msra.mxu0 0.0
    %148 = vmatprep.subr.mxu0 0.0
    %149 = vmatpush1.msra.mxu0 0.0
    %150 = vmatprep.subr.mxu0 0.0
    %151 = vmatpush1.msra.mxu0 0.0
    %152 = vmatprep.subr.mxu0 0.0
    %153 = vmatpush1.msra.mxu0 0.0
    %154 = vmatprep.subr.mxu0 0.0
    %155 = vmatpush1.msra.mxu0 0.0
    %156 = vmatprep.subr.mxu0 0.0
    %157 = vmatpush1.msra.mxu0 0.0
    %158 = vmatprep.subr.mxu0 0.0
    %159 = vmatpush1.msra.mxu0 0.0
    %160 = vmatprep.subr.mxu0 0.0
    %161 = vmatpush1.msra.mxu0 0.0
    %162 = vmatprep.subr.mxu0 0.0
    %163 = vmatpush1.msra.mxu0 0.0
    %164 = vmatprep.subr.mxu0 0.0
    %165 = vmatpush1.msra.mxu0 0.0
    %166 = vmatprep.subr.mxu0 0.0
    %167 = vmatpush1.msra.mxu0 0.0
    %168 = vmatprep.subr.mxu0 0.0
    %169 = vmatpush1.msra.mxu0 0.0
    %170 = vmatprep.subr.mxu0 0.0
    %171 = vmatpush1.msra.mxu0 0.0
    %172 = vmatprep.subr.mxu0 0.0
    %173 = vmatpush1.msra.mxu0 0.0
    %174 = vmatprep.subr.mxu0 0.0
    %175 = vmatpush1.msra.mxu0 0.0
    %176 = vmatprep.subr.mxu0 0.0
    %177 = vmatpush1.msra.mxu0 0.0
    %178 = vmatprep.subr.mxu0 0.0
    %179 = vmatpush1.msra.mxu0 0.0
    %180 = vmatprep.subr.mxu0 0.0
    %181 = vmatpush1.msra.mxu0 0.0
    %182 = vmatprep.subr.mxu0 0.0
    %183 = vmatpush1.msra.mxu0 0.0
    %184 = vmatprep.subr.mxu0 0.0
    %185 = vmatpush1.msra.mxu0 0.0
    %186 = vmatprep.subr.mxu0 0.0
    %187 = vmatpush1.msra.mxu0 0.0
    %188 = vmatprep.subr.mxu0 0.0
    %189 = vmatpush1.msra.mxu0 0.0
    %190 = vmatprep.subr.mxu0 0.0
    %191 = vmatpush1.msra.mxu0 0.0
    %192 = vmatprep.subr.mxu0 0.0
    %193 = vmatpush1.msra.mxu0 0.0
    %194 = vmatprep.subr.mxu0 0.0
    %195 = vmatpush1.msra.mxu0 0.0
    %196 = vmatprep.subr.mxu0 0.0
    %197 = vmatpush1.msra.mxu0 0.0
    %198 = vmatprep.subr.mxu0 0.0
    %199 = vmatpush1.msra.mxu0 0.0
    %200 = vmatprep.mubr.f32.mxu0 0.0
    %201 = vmatmul.mubr.f32.gmra.mrb[0].mxu0 %v134
    %v202 = vpop.f32.mrb[0].mxu0
    %v203 = vadd.f32 0.0, %v202
    %v204 = vpop.f32.mrb[0].mxu0
    %205 = vdwg.mxu0
    %206 = vst.msk [vmem:[#allocation8] sm:$0xff] %vm57, %v203
    // Predicated region
    $region26: #{tpu_custom_call.1} parent=1 // pred_check
      _
    $region27: #{tpu_custom_call.1} parent=1 // pred_check_branch
      %208 = sbr.rel (0) target = $region29
    $region28: #{tpu_custom_call.1} parent=1 // pred_region
      %s210 = ssub.s32 128, 128
      %211 = vsyncadd [#allocation4], %s210
      %s213 = sshll.u32 [#allocation8], 4
      %s214 = int_to_ptr.vmem [resolvable:$true] %s213
      %216 = dma.vmem_to_hbm [thread:$0]  %s214, 128, %s3, [#allocation4]
    $region29: #{tpu_custom_call.1} parent=1 // pred_fallthru
      _
    // Predicated region
    $region30: #{tpu_custom_call.1} parent=1 // pred_check
      _
    $region31: #{tpu_custom_call.1} parent=1 // pred_check_branch
      %218 = sbr.rel (0) target = $region33
    $region32: #{tpu_custom_call.1} parent=1 // pred_region
      %219 = dma.done [#allocation4], 128
    $region33: #{tpu_custom_call.1} parent=1 // pred_fallthru
      _
    %220 = vsyncpa [#allocation3], 1
    %221 = vsyncpa [#allocation6], 1
    %222 = vsyncpa [#allocation4], 1

</llo_original>
